<compile_context>
chip_gen: v6e
topology: v6e:2x2x1
jax: 0.10.0
libtpu: 0.0.40
codegen_flags: <defaults>
</compile_context>

<pallas_src>
import jax
import jax.numpy as jnp
from jax.experimental import pallas as pl
from jax.experimental.pallas import tpu as pltpu

_LANE = 128
_NEG = jnp.float32(-1e30)   # "minus infinity" for padded logit lanes


def _round_up(n, m):
    return ((n + m - 1) // m) * m


# ----------------------------- Pallas kernel -----------------------------

def actor_kernel(x_ref, w1_ref, b1_ref, w2_ref, b2_ref, w3_ref, b3_ref, o_ref):
    cdt = w1_ref.dtype                      # matmul operand dtype (bf16 or f32)

    # hoist resident weights / biases out of the sub-chunk loop
    w1 = w1_ref[...]
    w2 = w2_ref[...]
    w3 = w3_ref[...]
    b1 = b1_ref[...]
    b2 = b2_ref[...]
    b3 = b3_ref[...]

    tb = x_ref.shape[0]
    sub = 256 if (tb % 256 == 0 and tb > 256) else tb
    nsub = tb // sub

    # Static unroll over independent row sub-chunks: the strict
    # matmul->tanh->matmul->tanh->matmul->softmax chain of one chunk can then
    # be interleaved with the next chunk's MXU work by the scheduler.
    for c in range(nsub):
        r0 = c * sub
        x = x_ref[pl.ds(r0, sub), :].astype(cdt)

        # fc1 + tanh  (f32 accumulation on the MXU, f32 elementwise)
        h1 = jnp.tanh(
            jnp.dot(x, w1, preferred_element_type=jnp.float32) + b1)
        # fc2 + tanh
        h2 = jnp.tanh(
            jnp.dot(h1.astype(cdt), w2, preferred_element_type=jnp.float32) + b2)
        # fc3 (padded lanes carry a -1e30 bias -> exp() underflows to 0)
        logits = (
            jnp.dot(h2.astype(cdt), w3, preferred_element_type=jnp.float32) + b3)

        # numerically stable softmax along the lane axis (exact normalization)
        m = jnp.max(logits, axis=-1, keepdims=True)
        e = jnp.exp(logits - m)
        s = jnp.sum(e, axis=-1, keepdims=True)
        o_ref[pl.ds(r0, sub), :] = (e / s).astype(o_ref.dtype)


# ------------------------------- wrapper ----------------------------------

def _choose_batch_tiling(B):
    """Returns (tb, bp): batch tile rows and padded batch (bp % tb == 0).

    Small batches: one 16-aligned tile.  Large batches: an even number of
    grid steps (v7x has 2 TensorCores on the "parallel" axis) with tiles of
    up to 2048 rows, 256-aligned so the kernel can sub-chunk cleanly.
    """
    bq = _round_up(max(B, 1), 16)           # 16: bf16 sublane packing friendly
    if bq <= 512:
        return bq, bq
    grid = 2 * max(1, pl.cdiv(bq, 2 * 2048))
    tb = _round_up(pl.cdiv(bq, grid), 256)  # <= 2048 by construction
    return tb, grid * tb


def actor_forward(x, padded_params, out_dim):
    """x: [B, input_dim] -> probs: [B, out_dim] f32.

    padded_params from pad_actor_params; the three matmuls run in the padded
    params' dtype (bf16 by default) with f32 accumulation."""
    w1, b1, w2, b2, w3, b3 = padded_params
    B, in_dim = x.shape
    d_in, d1 = w1.shape
    d2 = w2.shape[1]
    d3 = w3.shape[1]

    tb, bp = _choose_batch_tiling(B)

    x = x.astype(jnp.float32)
    if bp != B or d_in != in_dim:
        # zero-pad batch rows (and, only if in_dim isn't 16-aligned, a few
        # feature columns).  No 128-wide feature padding of x any more.
        xp = jnp.zeros((bp, d_in), jnp.float32).at[:B, :in_dim].set(x)
    else:
        xp = x

    grid = (bp // tb,)
    itemsize = jnp.dtype(w1.dtype).itemsize
    cost = pl.CostEstimate(
        flops=2 * bp * (d_in * d1 + d1 * d2 + d2 * d3),
        transcendentals=bp * (d1 + d2 + d3),
        bytes_accessed=(bp * d_in * 4 + bp * d3 * 4
                        + (w1.size + w2.size + w3.size) * itemsize
                        + (b1.size + b2.size + b3.size) * 4),
    )

    out = pl.pallas_call(
        actor_kernel,
        out_shape=jax.ShapeDtypeStruct((bp, d3), jnp.float32),
        grid=grid,
        in_specs=[
            pl.BlockSpec((tb, d_in), lambda i: (i, 0)),   # x tile (narrow K)
            pl.BlockSpec((d_in, d1), lambda i: (0, 0)),   # w1 (resident)
            pl.BlockSpec((1, d1), lambda i: (0, 0)),      # b1
            pl.BlockSpec((d1, d2), lambda i: (0, 0)),     # w2
            pl.BlockSpec((1, d2), lambda i: (0, 0)),      # b2
            pl.BlockSpec((d2, d3), lambda i: (0, 0)),     # w3
            pl.BlockSpec((1, d3), lambda i: (0, 0)),      # b3
        ],
        out_specs=pl.BlockSpec((tb, d3), lambda i: (i, 0)),
        compiler_params=pltpu.CompilerParams(
            dimension_semantics=("parallel",)),
        cost_estimate=cost,
    )(xp, w1, b1, w2, b2, w3, b3)

    return out[:B, :out_dim]


# -------------------------- parameter construction -----------------------

def orthogonal_weight(key, out_dim, in_dim, gain=1.0):
    """(Semi-)orthogonal init matching nn.init.orthogonal_ semantics.
    Returns weight in PyTorch layout [out_dim, in_dim]."""
    rows, cols = out_dim, in_dim
    big, small = max(rows, cols), min(rows, cols)
    a = jax.random.normal(key, (big, small), jnp.float32)
    q, r = jnp.linalg.qr(a)
    q = q * jnp.sign(jnp.diagonal(r))
    if rows < cols:
        q = q.T
    return gain * q  # [out_dim, in_dim]


def make_actor_params(key, input_dim, hidden_dim, output_dim):
    """True (unpadded) params in kernel layout: W as [in, out], b as [1, out]."""
    k1, k2, k3 = jax.random.split(key, 3)
    w1 = orthogonal_weight(k1, 128, input_dim).T           # [input_dim, 128]
    w2 = orthogonal_weight(k2, hidden_dim, 128).T          # [128, hidden_dim]
    w3 = orthogonal_weight(k3, output_dim, hidden_dim).T   # [hidden_dim, output_dim]
    b1 = jnp.zeros((1, 128), jnp.float32)
    b2 = jnp.zeros((1, hidden_dim), jnp.float32)
    b3 = jnp.zeros((1, output_dim), jnp.float32)
    return (w1, b1, w2, b2, w3, b3)


def pad_actor_params(params, compute_dtype=jnp.bfloat16, lane=_LANE):
    """Pad weight output dims to multiples of 128 (lane-dense MXU / stores).

    W1's contraction dim (the x features) is only padded to a multiple of 16,
    NOT 128, so x can be streamed from HBM unpadded.  b1/b2 padded lanes are 0
    (tanh(0)=0, downstream zero weights kill them); b3 padded lanes are -1e30
    so the softmax assigns them zero probability.  Weights take compute_dtype
    (bf16 by default -- best on v5e/v6e/v7x MXUs); biases stay f32."""
    w1, b1, w2, b2, w3, b3 = params

    def pad_w(w, row_mult, col_mult):
        r, c = w.shape
        rp, cp = _round_up(r, row_mult), _round_up(c, col_mult)
        return jnp.zeros((rp, cp), compute_dtype).at[:r, :c].set(
            w.astype(compute_dtype))

    def pad_b(b, fill):
        c = b.shape[1]
        cp = _round_up(c, lane)
        return jnp.full((1, cp), fill, jnp.float32).at[:, :c].set(
            b.astype(jnp.float32))

    return (pad_w(w1, 16, lane), pad_b(b1, 0.0),
            pad_w(w2, lane, lane), pad_b(b2, 0.0),
            pad_w(w3, lane, lane), pad_b(b3, _NEG))


# TODO(synk): conv=True branch (Conv2d(1,64,3) -> Tanh -> Conv2d(64,hidden,2)
# -> Tanh -> flatten) is not implemented; this implements the default MLP path.


# ------------------------------- reference --------------------------------

def actor_ref(x, params):
    w1, b1, w2, b2, w3, b3 = params
    h1 = jnp.tanh(x @ w1 + b1)
    h2 = jnp.tanh(h1 @ w2 + b2)
    return jax.nn.softmax(h2 @ w3 + b3, axis=-1)


# --------------------------------- main ------------------------------------

if __name__ == "__main__":
    key = jax.random.PRNGKey(0)
    kx, kp, kx2 = jax.random.split(key, 3)

    input_dim, hidden_dim, output_dim = 32, 32, 8
    params = make_actor_params(kp, input_dim, hidden_dim, output_dim)

    # f32-matmul path: tight-tolerance correctness check at module-scale shapes
    params_f32 = pad_actor_params(params, jnp.float32)
    x = jax.random.normal(kx, (8, input_dim), jnp.float32)
    out = jax.block_until_ready(actor_forward(x, params_f32, output_dim))
    ref = actor_ref(x, params)
    assert out.shape == (8, output_dim)
    assert jnp.allclose(out, ref, atol=2e-3, rtol=2e-3)
    assert jnp.allclose(jnp.sum(out, axis=-1), 1.0, atol=1e-5)

    # larger batch exercising an even multi-step grid (two 512-row tiles,
    # each processed as 2 x 256-row sub-chunks inside the kernel)
    xb = jax.random.normal(kx2, (1000, input_dim), jnp.float32)
    out_big = jax.block_until_ready(actor_forward(xb, params_f32, output_dim))
    assert jnp.allclose(out_big, actor_ref(xb, params), atol=2e-3, rtol=2e-3)
    assert jnp.allclose(jnp.sum(out_big, axis=-1), 1.0, atol=1e-5)

    # default bf16-matmul path (f32 accumulation, f32 tanh/softmax)
    params_bf16 = pad_actor_params(params)   # compute_dtype defaults to bf16
    out_bf16 = jax.block_until_ready(actor_forward(xb, params_bf16, output_dim))
    assert jnp.allclose(out_bf16, actor_ref(xb, params), atol=3e-2, rtol=3e-2)
    assert jnp.allclose(jnp.sum(out_bf16, axis=-1), 1.0, atol=1e-5)

    print("KERNEL_OK")
</pallas_src>

<mosaic_0001>
module attributes {stable_mosaic.version = 11 : i64} {
  func.func @actor_kernel(%arg0: i32, %arg1: memref<16x32xf32, #tpu.memory_space<vmem>>, %arg2: memref<32x128xf32, #tpu.memory_space<vmem>>, %arg3: memref<1x128xf32, #tpu.memory_space<vmem>>, %arg4: memref<128x128xf32, #tpu.memory_space<vmem>>, %arg5: memref<1x128xf32, #tpu.memory_space<vmem>>, %arg6: memref<128x128xf32, #tpu.memory_space<vmem>>, %arg7: memref<1x128xf32, #tpu.memory_space<vmem>>, %arg8: memref<16x128xf32, #tpu.memory_space<vmem>>) attributes {dimension_semantics = [#tpu.dimension_semantics<parallel>], iteration_bounds = array<i64: 1>, scalar_prefetch = 0 : i64, scratch_operands = 0 : i64, tpu.core_type = #tpu.core_type<tc>, window_params = [{transform_indices = @transform_0, window_bounds = array<i64: 16, 32>}, {pipeline_mode = #tpu.pipeline_mode<synchronous>, transform_indices = @transform_1, window_bounds = array<i64: 32, 128>}, {pipeline_mode = #tpu.pipeline_mode<synchronous>, transform_indices = @transform_2, window_bounds = array<i64: 1, 128>}, {pipeline_mode = #tpu.pipeline_mode<synchronous>, transform_indices = @transform_3, window_bounds = array<i64: 128, 128>}, {pipeline_mode = #tpu.pipeline_mode<synchronous>, transform_indices = @transform_4, window_bounds = array<i64: 1, 128>}, {pipeline_mode = #tpu.pipeline_mode<synchronous>, transform_indices = @transform_5, window_bounds = array<i64: 128, 128>}, {pipeline_mode = #tpu.pipeline_mode<synchronous>, transform_indices = @transform_6, window_bounds = array<i64: 1, 128>}, {transform_indices = @transform_7, window_bounds = array<i64: 16, 128>}]} {
    %c0 = arith.constant 0 : index
    %c0_0 = arith.constant 0 : index
    %0 = vector.load %arg2[%c0, %c0_0] : memref<32x128xf32, #tpu.memory_space<vmem>>, vector<32x128xf32>
    %c0_1 = arith.constant 0 : index
    %c0_2 = arith.constant 0 : index
    %1 = vector.load %arg4[%c0_1, %c0_2] : memref<128x128xf32, #tpu.memory_space<vmem>>, vector<128x128xf32>
    %c0_3 = arith.constant 0 : index
    %c0_4 = arith.constant 0 : index
    %2 = vector.load %arg6[%c0_3, %c0_4] : memref<128x128xf32, #tpu.memory_space<vmem>>, vector<128x128xf32>
    %c0_5 = arith.constant 0 : index
    %c0_6 = arith.constant 0 : index
    %3 = vector.load %arg3[%c0_5, %c0_6] : memref<1x128xf32, #tpu.memory_space<vmem>>, vector<1x128xf32>
    %c0_7 = arith.constant 0 : index
    %c0_8 = arith.constant 0 : index
    %4 = vector.load %arg5[%c0_7, %c0_8] : memref<1x128xf32, #tpu.memory_space<vmem>>, vector<1x128xf32>
    %c0_9 = arith.constant 0 : index
    %c0_10 = arith.constant 0 : index
    %5 = vector.load %arg7[%c0_9, %c0_10] : memref<1x128xf32, #tpu.memory_space<vmem>>, vector<1x128xf32>
    %c0_11 = arith.constant 0 : index
    %c0_12 = arith.constant 0 : index
    %6 = vector.load %arg1[%c0_11, %c0_12] : memref<16x32xf32, #tpu.memory_space<vmem>>, vector<16x32xf32>
    %cst = arith.constant dense<0.000000e+00> : vector<16x128xf32>
    %7 = tpu.matmul %6, %0, %cst {dimension_numbers = #tpu.dot_dimension_numbers<[1], [0], [0], [1], [0, 0, 1, 1], [], []>} : vector<16x32xf32>, vector<32x128xf32>, vector<16x128xf32> -> vector<16x128xf32>
    %8 = vector.broadcast %3 : vector<1x128xf32> to vector<16x128xf32>
    %9 = arith.addf %7, %8 : vector<16x128xf32>
    %10 = math.tanh %9 : vector<16x128xf32>
    %cst_13 = arith.constant dense<0.000000e+00> : vector<16x128xf32>
    %11 = tpu.matmul %10, %1, %cst_13 {dimension_numbers = #tpu.dot_dimension_numbers<[1], [0], [0], [1], [0, 0, 1, 1], [], []>} : vector<16x128xf32>, vector<128x128xf32>, vector<16x128xf32> -> vector<16x128xf32>
    %12 = vector.broadcast %4 : vector<1x128xf32> to vector<16x128xf32>
    %13 = arith.addf %11, %12 : vector<16x128xf32>
    %14 = math.tanh %13 : vector<16x128xf32>
    %cst_14 = arith.constant dense<0.000000e+00> : vector<16x128xf32>
    %15 = tpu.matmul %14, %2, %cst_14 {dimension_numbers = #tpu.dot_dimension_numbers<[1], [0], [0], [1], [0, 0, 1, 1], [], []>} : vector<16x128xf32>, vector<128x128xf32>, vector<16x128xf32> -> vector<16x128xf32>
    %16 = vector.broadcast %5 : vector<1x128xf32> to vector<16x128xf32>
    %17 = arith.addf %15, %16 : vector<16x128xf32>
    %cst_15 = arith.constant dense<0xFF800000> : vector<16xf32>
    %18 = vector.multi_reduction <maximumf>, %17, %cst_15 [1] : vector<16x128xf32> to vector<16xf32>
    %19 = vector.shape_cast %18 : vector<16xf32> to vector<16x1xf32>
    %20 = vector.broadcast %19 : vector<16x1xf32> to vector<16x128xf32>
    %21 = arith.subf %17, %20 : vector<16x128xf32>
    %22 = math.exp %21 : vector<16x128xf32>
    %cst_16 = arith.constant dense<0.000000e+00> : vector<16xf32>
    %23 = vector.multi_reduction <add>, %22, %cst_16 [1] : vector<16x128xf32> to vector<16xf32>
    %24 = vector.shape_cast %23 : vector<16xf32> to vector<16x1xf32>
    %25 = vector.broadcast %24 : vector<16x1xf32> to vector<16x128xf32>
    %26 = arith.divf %22, %25 : vector<16x128xf32>
    %c0_17 = arith.constant 0 : index
    %c0_18 = arith.constant 0 : index
    %27 = vector.load %arg8[%c0_17, %c0_18] : memref<16x128xf32, #tpu.memory_space<vmem>>, vector<16x128xf32>
    tpu.vector_store %arg8[%c0_17, %c0_18], %26 {strides = array<i32>} : memref<16x128xf32, #tpu.memory_space<vmem>>, vector<16x128xf32>,
    return
  }
  func.func @transform_0(%arg0: i32) -> (i32, i32) {
    %c0_i32 = arith.constant 0 : i32
    %c0_i32_0 = arith.constant 0 : i32
    return %arg0, %c0_i32 : i32, i32
  }
  func.func @transform_1(%arg0: i32) -> (i32, i32) {
    %c0_i32 = arith.constant 0 : i32
    %c0_i32_0 = arith.constant 0 : i32
    %c0_i32_1 = arith.constant 0 : i32
    return %c0_i32, %c0_i32_0 : i32, i32
  }
  func.func @transform_2(%arg0: i32) -> (i32, i32) {
    %c0_i32 = arith.constant 0 : i32
    %c0_i32_0 = arith.constant 0 : i32
    %c0_i32_1 = arith.constant 0 : i32
    return %c0_i32, %c0_i32_0 : i32, i32
  }
  func.func @transform_3(%arg0: i32) -> (i32, i32) {
    %c0_i32 = arith.constant 0 : i32
    %c0_i32_0 = arith.constant 0 : i32
    %c0_i32_1 = arith.constant 0 : i32
    return %c0_i32, %c0_i32_0 : i32, i32
  }
  func.func @transform_4(%arg0: i32) -> (i32, i32) {
    %c0_i32 = arith.constant 0 : i32
    %c0_i32_0 = arith.constant 0 : i32
    %c0_i32_1 = arith.constant 0 : i32
    return %c0_i32, %c0_i32_0 : i32, i32
  }
  func.func @transform_5(%arg0: i32) -> (i32, i32) {
    %c0_i32 = arith.constant 0 : i32
    %c0_i32_0 = arith.constant 0 : i32
    %c0_i32_1 = arith.constant 0 : i32
    return %c0_i32, %c0_i32_0 : i32, i32
  }
  func.func @transform_6(%arg0: i32) -> (i32, i32) {
    %c0_i32 = arith.constant 0 : i32
    %c0_i32_0 = arith.constant 0 : i32
    %c0_i32_1 = arith.constant 0 : i32
    return %c0_i32, %c0_i32_0 : i32, i32
  }
  func.func @transform_7(%arg0: i32) -> (i32, i32) {
    %c0_i32 = arith.constant 0 : i32
    %c0_i32_0 = arith.constant 0 : i32
    return %arg0, %c0_i32 : i32, i32
  }
}

</mosaic_0001>

<llo_original>
// kernel: tpu_custom_call.1
$region0: #{tpu_custom_call.1}
  #allocation0 [shape = 'u32[]', space=smem, size = 0x4, offset = 0x4, fixed_abs, tag = 'smem constant byte address 0x4 - core index']
  #allocation1 [shape = 'u32[144,128]{1,0:T(1,128)}', space=vmem, size = 0x12000, scoped, tag = 'internal scratch']
  %s0 = inlined_call_operand.hbm [shape: f32[16,32], index: 0, kind: input, shape index: {}]
  %s1 = inlined_call_operand.hbm [shape: f32[32,128], index: 1, kind: input, shape index: {}]
  %s2 = inlined_call_operand.vmem [shape: f32[1,128], index: 2, kind: input, shape index: {}]
  %s3 = inlined_call_operand.hbm [shape: f32[128,128], index: 3, kind: input, shape index: {}]
  %s4 = inlined_call_operand.vmem [shape: f32[1,128], index: 4, kind: input, shape index: {}]
  %s5 = inlined_call_operand.hbm [shape: f32[128,128], index: 5, kind: input, shape index: {}]
  %s6 = inlined_call_operand.vmem [shape: f32[1,128], index: 6, kind: input, shape index: {}]
  %s7 = inlined_call_operand.hbm [shape: f32[16,128], index: 7, kind: output, shape index: {}]
  %s8 = sld [smem:[#allocation0]]
  $region54: #{tpu_custom_call.1} parent=0
    _
  %s10 = ssub.s32 1, %s8
  %s11 = scalar_select 0, %s10, %s8
  $region1: #{tpu_custom_call.1} parent=0
    #allocation2 [shape = 'u8[8192]{0}', space=vmem, size = 0x2000, scoped, tag = 'input window, operand 0, single buffered']
    #allocation3 [shape = 's32[1]{0}', space=sflag, size = 0x4, scoped, tag = 'scoped memory for tpu_custom_call.1']
    #allocation4 [shape = 's32[1]{0}', space=sflag, size = 0x4, scoped, tag = 'scoped memory for tpu_custom_call.1']
    #allocation5 [shape = 'u8[16384]{0}', space=vmem, size = 0x4000, scoped, tag = 'input window, operand 1, single buffered']
    #allocation6 [shape = 's32[1]{0}', space=sflag, size = 0x4, scoped, tag = 'scoped memory for tpu_custom_call.1']
    #allocation7 [shape = 'u8[65536]{0}', space=vmem, size = 0x10000, scoped, tag = 'input window, operand 3, single buffered']
    #allocation8 [shape = 'u8[65536]{0}', space=vmem, size = 0x10000, scoped, tag = 'input window, operand 5, single buffered']
    #allocation9 [shape = 's32[1]{0}', space=sflag, size = 0x4, scoped, tag = 'scoped memory for tpu_custom_call.1']
    #allocation10 [shape = 'u8[8192]{0}', space=vmem, size = 0x2000, scoped, tag = 'output window, operand 0, single buffered']
    %12 = vsyncpa [#allocation3], 0
    %13 = vsyncpa [#allocation6], 0
    %14 = vsyncpa [#allocation9], 0
    %15 = vsyncpa [#allocation4], 0
    // Predicated region
    $region2: #{tpu_custom_call.1} parent=1 // pred_check
      _
    $region3: #{tpu_custom_call.1} parent=1 // pred_check_branch
      %17 = sbr.rel (0) target = $region5
    $region4: #{tpu_custom_call.1} parent=1 // pred_region
      %s19 = ssub.s32 256, 256
      %20 = vsyncadd [#allocation3], %s19
      %s21 = sshll.u32 [#allocation2], 4
      %s22 = int_to_ptr.vmem [resolvable:$true] %s21
      %27 = dma.hbm_to_vmem [thread:$0]  %s0, 256, %s22, [#allocation3], 128, 128, 8
    $region5: #{tpu_custom_call.1} parent=1 // pred_fallthru
      _
    // Predicated region
    $region6: #{tpu_custom_call.1} parent=1 // pred_check
      _
    $region7: #{tpu_custom_call.1} parent=1 // pred_check_branch
      %29 = sbr.rel (0) target = $region9
    $region8: #{tpu_custom_call.1} parent=1 // pred_region
      %s31 = ssub.s32 512, 512
      %32 = vsyncadd [#allocation6], %s31
      %s33 = sshll.u32 [#allocation5], 4
      %s34 = int_to_ptr.vmem [resolvable:$true] %s33
      %39 = dma.hbm_to_vmem [thread:$0]  %s1, 512, %s34, [#allocation6], 128, 128, 8
    $region9: #{tpu_custom_call.1} parent=1 // pred_fallthru
      _
    // Predicated region
    $region10: #{tpu_custom_call.1} parent=1 // pred_check
      _
    $region11: #{tpu_custom_call.1} parent=1 // pred_check_branch
      %41 = sbr.rel (0) target = $region13
    $region12: #{tpu_custom_call.1} parent=1 // pred_region
      _
    $region13: #{tpu_custom_call.1} parent=1 // pred_fallthru
      _
    // Predicated region
    $region14: #{tpu_custom_call.1} parent=1 // pred_check
      _
    $region15: #{tpu_custom_call.1} parent=1 // pred_check_branch
      %43 = sbr.rel (0) target = $region17
    $region16: #{tpu_custom_call.1} parent=1 // pred_region
      %s45 = ssub.s32 2048, 2048
      %46 = vsyncadd [#allocation6], %s45
      %s47 = sshll.u32 [#allocation7], 4
      %s48 = int_to_ptr.vmem [resolvable:$true] %s47
      %53 = dma.hbm_to_vmem [thread:$0]  %s3, 2048, %s48, [#allocation6], 128, 128, 8
    $region17: #{tpu_custom_call.1} parent=1 // pred_fallthru
      _
    // Predicated region
    $region18: #{tpu_custom_call.1} parent=1 // pred_check
      _
    $region19: #{tpu_custom_call.1} parent=1 // pred_check_branch
      %55 = sbr.rel (0) target = $region21
    $region20: #{tpu_custom_call.1} parent=1 // pred_region
      _
    $region21: #{tpu_custom_call.1} parent=1 // pred_fallthru
      _
    // Predicated region
    $region22: #{tpu_custom_call.1} parent=1 // pred_check
      _
    $region23: #{tpu_custom_call.1} parent=1 // pred_check_branch
      %57 = sbr.rel (0) target = $region25
    $region24: #{tpu_custom_call.1} parent=1 // pred_region
      %s59 = ssub.s32 2048, 2048
      %60 = vsyncadd [#allocation9], %s59
      %s61 = sshll.u32 [#allocation8], 4
      %s62 = int_to_ptr.vmem [resolvable:$true] %s61
      %67 = dma.hbm_to_vmem [thread:$0]  %s5, 2048, %s62, [#allocation9], 128, 128, 8
    $region25: #{tpu_custom_call.1} parent=1 // pred_fallthru
      _
    // Predicated region
    $region26: #{tpu_custom_call.1} parent=1 // pred_check
      _
    $region27: #{tpu_custom_call.1} parent=1 // pred_check_branch
      %69 = sbr.rel (0) target = $region29
    $region28: #{tpu_custom_call.1} parent=1 // pred_region
      _
    $region29: #{tpu_custom_call.1} parent=1 // pred_fallthru
      _
    // Predicated region
    $region30: #{tpu_custom_call.1} parent=1 // pred_check
      _
    $region31: #{tpu_custom_call.1} parent=1 // pred_check_branch
      %71 = sbr.rel (0) target = $region33
    $region32: #{tpu_custom_call.1} parent=1 // pred_region
      %72 = dma.done [#allocation3], 256
    $region33: #{tpu_custom_call.1} parent=1 // pred_fallthru
      _
    // Predicated region
    $region34: #{tpu_custom_call.1} parent=1 // pred_check
      _
    $region35: #{tpu_custom_call.1} parent=1 // pred_check_branch
      %74 = sbr.rel (0) target = $region37
    $region36: #{tpu_custom_call.1} parent=1 // pred_region
      %75 = dma.done [#allocation6], 512
    $region37: #{tpu_custom_call.1} parent=1 // pred_fallthru
      _
    // Predicated region
    $region38: #{tpu_custom_call.1} parent=1 // pred_check
      _
    $region39: #{tpu_custom_call.1} parent=1 // pred_check_branch
      %77 = sbr.rel (0) target = $region41
    $region40: #{tpu_custom_call.1} parent=1 // pred_region
      %78 = dma.done [#allocation6], 2048
    $region41: #{tpu_custom_call.1} parent=1 // pred_fallthru
      _
    // Predicated region
    $region42: #{tpu_custom_call.1} parent=1 // pred_check
      _
    $region43: #{tpu_custom_call.1} parent=1 // pred_check_branch
      %80 = sbr.rel (0) target = $region45
    $region44: #{tpu_custom_call.1} parent=1 // pred_region
      %81 = dma.done [#allocation9], 2048
    $region45: #{tpu_custom_call.1} parent=1 // pred_fallthru
      _
    %v82 = vld [vmem:[#allocation5] sm:$0xff]
    %v83 = vld [vmem:[#allocation5 + $0x8] sm:$0xff]
    %v84 = vld [vmem:[#allocation5 + $0x10] sm:$0xff]
    %v85 = vld [vmem:[#allocation5 + $0x18] sm:$0xff]
    %v86 = vld [vmem:[#allocation7] sm:$0xff]
    %v87 = vld [vmem:[#allocation7 + $0x8] sm:$0xff]
    %v88 = vld [vmem:[#allocation7 + $0x10] sm:$0xff]
    %v89 = vld [vmem:[#allocation7 + $0x18] sm:$0xff]
    %v90 = vld [vmem:[#allocation7 + $0x20] sm:$0xff]
    %v91 = vld [vmem:[#allocation7 + $0x28] sm:$0xff]
    %v92 = vld [vmem:[#allocation7 + $0x30] sm:$0xff]
    %v93 = vld [vmem:[#allocation7 + $0x38] sm:$0xff]
    %v94 = vld [vmem:[#allocation7 + $0x40] sm:$0xff]
    %v95 = vld [vmem:[#allocation7 + $0x48] sm:$0xff]
    %v96 = vld [vmem:[#allocation7 + $0x50] sm:$0xff]
    %v97 = vld [vmem:[#allocation7 + $0x58] sm:$0xff]
    %v98 = vld [vmem:[#allocation7 + $0x60] sm:$0xff]
    %v99 = vld [vmem:[#allocation7 + $0x68] sm:$0xff]
    %v100 = vld [vmem:[#allocation7 + $0x70] sm:$0xff]
    %v101 = vld [vmem:[#allocation7 + $0x78] sm:$0xff]
    %v102 = vld [vmem:[#allocation8] sm:$0xff]
    %v103 = vld [vmem:[#allocation8 + $0x8] sm:$0xff]
    %v104 = vld [vmem:[#allocation8 + $0x10] sm:$0xff]
    %v105 = vld [vmem:[#allocation8 + $0x18] sm:$0xff]
    %v106 = vld [vmem:[#allocation8 + $0x20] sm:$0xff]
    %v107 = vld [vmem:[#allocation8 + $0x28] sm:$0xff]
    %v108 = vld [vmem:[#allocation8 + $0x30] sm:$0xff]
    %v109 = vld [vmem:[#allocation8 + $0x38] sm:$0xff]
    %v110 = vld [vmem:[#allocation8 + $0x40] sm:$0xff]
    %v111 = vld [vmem:[#allocation8 + $0x48] sm:$0xff]
    %v112 = vld [vmem:[#allocation8 + $0x50] sm:$0xff]
    %v113 = vld [vmem:[#allocation8 + $0x58] sm:$0xff]
    %v114 = vld [vmem:[#allocation8 + $0x60] sm:$0xff]
    %v115 = vld [vmem:[#allocation8 + $0x68] sm:$0xff]
    %v116 = vld [vmem:[#allocation8 + $0x70] sm:$0xff]
    %v117 = vld [vmem:[#allocation8 + $0x78] sm:$0xff]
    %v118 = vld [vmem:[%s2] sm:$0x1]
    %v119 = vld [vmem:[%s4] sm:$0x1]
    %v120 = vld [vmem:[%s6] sm:$0x1]
    %v121 = vld [vmem:[#allocation2] sm:$0xff]
    %v122 = vld [vmem:[#allocation2 + $0x8] sm:$0xff]
    %v124 = vlaneseq
    %v125 = vshrl.u32 %v124, 7
    %v126 = vsub.s32 0, %v125
    %v127 = vrot.slane %v118, %v126
    %vm129 = vcmask 261120
    %v131 = vsel %vm129, %v121, 0
    %v134 = vsel %vm129, %v122, 0
    %136 = vmatprep.subr.mxu0 0.0
    %137 = vmatpush1.msra.mxu0 0.0
    %138 = vmatprep.subr.mxu0 0.0
    %139 = vmatpush1.msra.mxu0 0.0
    %140 = vmatprep.subr.mxu0 0.0
    %141 = vmatpush1.msra.mxu0 0.0
    %142 = vmatprep.subr.mxu0 0.0
    %143 = vmatpush1.msra.mxu0 0.0
    %144 = vmatprep.subr.mxu0 0.0
    %145 = vmatpush1.msra.mxu0 0.0
    %146 = vmatprep.subr.mxu0 0.0
    %147 = vmatpush1.msra.mxu0 0.0
    %148 = vmatprep.subr.mxu0 0.0
    %149 = vmatpush1.msra.mxu0 0.0
    %150 = vmatprep.subr.mxu0 0.0
    %151 = vmatpush1.msra.mxu0 0.0
    %152 = vmatprep.subr.mxu0 0.0
    %153 = vmatpush1.msra.mxu0 0.0
    %154 = vmatprep.subr.mxu0 0.0
    %155 = vmatpush1.msra.mxu0 0.0
    %156 = vmatprep.subr.mxu0 0.0
    %157 = vmatpush1.msra.mxu0 0.0
    %158 = vmatprep.subr.mxu0 0.0
    %159 = vmatpush1.msra.mxu0 0.0
    %160 = vmatprep.subr.mxu0 0.0
    %161 = vmatpush1.msra.mxu0 %v85
    %162 = vmatprep.subr.mxu0 0.0
    %163 = vmatpush1.msra.mxu0 %v84
    %164 = vmatprep.subr.mxu0 0.0
    %165 = vmatpush1.msra.mxu0 %v83
    %166 = vmatprep.subr.mxu0 0.0
    %167 = vmatpush1.msra.mxu0 %v82
    %168 = vmatprep.subr.mxu0 0.0
    %169 = vmatpush2.msra.mxu0 0.0
    %170 = vmatprep.subr.mxu0 0.0
    %171 = vmatpush2.msra.mxu0 0.0
    %172 = vmatprep.subr.mxu0 0.0
    %173 = vmatpush2.msra.mxu0 0.0
    %174 = vmatprep.subr.mxu0 0.0
    %175 = vmatpush2.msra.mxu0 0.0
    %176 = vmatprep.subr.mxu0 0.0
    %177 = vmatpush2.msra.mxu0 0.0
    %178 = vmatprep.subr.mxu0 0.0
    %179 = vmatpush2.msra.mxu0 0.0
    %180 = vmatprep.subr.mxu0 0.0
    %181 = vmatpush2.msra.mxu0 0.0
    %182 = vmatprep.subr.mxu0 0.0
    %183 = vmatpush2.msra.mxu0 0.0
    %184 = vmatprep.subr.mxu0 0.0
    %185 = vmatpush2.msra.mxu0 0.0
    %186 = vmatprep.subr.mxu0 0.0
    %187 = vmatpush2.msra.mxu0 0.0
    %188 = vmatprep.subr.mxu0 0.0
    %189 = vmatpush2.msra.mxu0 0.0
    %190 = vmatprep.subr.mxu0 0.0
    %191 = vmatpush2.msra.mxu0 0.0
    %192 = vmatprep.subr.mxu0 0.0
    %193 = vmatpush2.msra.mxu0 0.0
    %194 = vmatprep.subr.mxu0 0.0
    %195 = vmatpush2.msra.mxu0 0.0
    %196 = vmatprep.subr.mxu0 0.0
    %197 = vmatpush2.msra.mxu0 0.0
    %198 = vmatprep.subr.mxu0 0.0
    %199 = vmatpush2.msra.mxu0 0.0
    %200 = vmatprep.mubr.f32.mxu0 0.0
    %201 = vmatmul.mubr.f32.gmra.mxu0 %v131
    %v202 = vpop.f32.mrf.mxu0
    %v203 = vadd.f32 %v127, %v202
    %v204 = vpop.f32.mrf.mxu0
    %205 = vmatprep.mubr.f32.mxu0 0.0
    %206 = vmatmul.mubr.f32.gmra.mxu0 %v134
    %v207 = vpop.f32.mrf.mxu0
    %v208 = vadd.f32 %v127, %v207
    %v209 = vpop.f32.mrf.mxu0
    %210 = vdwg.mxu0
    %v211 = vtanh.pop %v203
    %v212 = vtanh.pop %v208
    %v214 = vlaneseq
    %v215 = vshrl.u32 %v214, 7
    %v216 = vsub.s32 0, %v215
    %v217 = vrot.slane %v119, %v216
    %219 = vmatprep.subr.mxu0 0.0
    %220 = vmatpush1.msra.mxu0 %v101
    %221 = vmatprep.subr.mxu0 0.0
    %222 = vmatpush1.msra.mxu0 %v100
    %223 = vmatprep.subr.mxu0 0.0
    %224 = vmatpush1.msra.mxu0 %v99
    %225 = vmatprep.subr.mxu0 0.0
    %226 = vmatpush1.msra.mxu0 %v98
    %227 = vmatprep.subr.mxu0 0.0
    %228 = vmatpush1.msra.mxu0 %v97
    %229 = vmatprep.subr.mxu0 0.0
    %230 = vmatpush1.msra.mxu0 %v96
    %231 = vmatprep.subr.mxu0 0.0
    %232 = vmatpush1.msra.mxu0 %v95
    %233 = vmatprep.subr.mxu0 0.0
    %234 = vmatpush1.msra.mxu0 %v94
    %235 = vmatprep.subr.mxu0 0.0
    %236 = vmatpush1.msra.mxu0 %v93
    %237 = vmatprep.subr.mxu0 0.0
    %238 = vmatpush1.msra.mxu0 %v92
    %239 = vmatprep.subr.mxu0 0.0
    %240 = vmatpush1.msra.mxu0 %v91
    %241 = vmatprep.subr.mxu0 0.0
    %242 = vmatpush1.msra.mxu0 %v90
    %243 = vmatprep.subr.mxu0 0.0
    %244 = vmatpush1.msra.mxu0 %v89
    %245 = vmatprep.subr.mxu0 0.0
    %246 = vmatpush1.msra.mxu0 %v88
    %247 = vmatprep.subr.mxu0 0.0
    %248 = vmatpush1.msra.mxu0 %v87
    %249 = vmatprep.subr.mxu0 0.0
    %250 = vmatpush1.msra.mxu0 %v86
    %251 = vmatprep.subr.mxu0 0.0
    %252 = vmatpush2.msra.mxu0 0.0
    %253 = vmatprep.subr.mxu0 0.0
    %254 = vmatpush2.msra.mxu0 0.0
    %255 = vmatprep.subr.mxu0 0.0
    %256 = vmatpush2.msra.mxu0 0.0
    %257 = vmatprep.subr.mxu0 0.0
    %258 = vmatpush2.msra.mxu0 0.0
    %259 = vmatprep.subr.mxu0 0.0
    %260 = vmatpush2.msra.mxu0 0.0
    %261 = vmatprep.subr.mxu0 0.0
    %262 = vmatpush2.msra.mxu0 0.0
    %263 = vmatprep.subr.mxu0 0.0
    %264 = vmatpush2.msra.mxu0 0.0
    %265 = vmatprep.subr.mxu0 0.0
    %266 = vmatpush2.msra.mxu0 0.0
    %267 = vmatprep.subr.mxu0 0.0
    %268 = vmatpush2.msra.mxu0 0.0
    %269 = vmatprep.subr.mxu0 0.0
    %270 = vmatpush2.msra.mxu0 0.0
    %271 = vmatprep.subr.mxu0 0.0
    %272 = vmatpush2.msra.mxu0 0.0
    %273 = vmatprep.subr.mxu0 0.0
    %274 = vmatpush2.msra.mxu0 0.0
    %275 = vmatprep.subr.mxu0 0.0
    %276 = vmatpush2.msra.mxu0 0.0
    %277 = vmatprep.subr.mxu0 0.0
    %278 = vmatpush2.msra.mxu0 0.0
    %279 = vmatprep.subr.mxu0 0.0
    %280 = vmatpush2.msra.mxu0 0.0
    %281 = vmatprep.subr.mxu0 0.0
    %282 = vmatpush2.msra.mxu0 0.0
    %283 = vmatprep.mubr.f32.mxu0 0.0
    %284 = vmatmul.mubr.f32.gmra.mxu0 %v211
    %v285 = vpop.f32.mrf.mxu0
    %v286 = vadd.f32 %v217, %v285
    %v287 = vpop.f32.mrf.mxu0
    %288 = vmatprep.mubr.f32.mxu0 0.0
    %289 = vmatmul.mubr.f32.gmra.mxu0 %v212
    %v290 = vpop.f32.mrf.mxu0
    %v291 = vadd.f32 %v217, %v290
    %v292 = vpop.f32.mrf.mxu0
    %293 = vdwg.mxu0
    %v294 = vtanh.pop %v286
    %v295 = vtanh.pop %v291
    %v297 = vlaneseq
    %v298 = vshrl.u32 %v297, 7
    %v299 = vsub.s32 0, %v298
    %v300 = vrot.slane %v120, %v299
    %302 = vmatprep.subr.mxu0 0.0
    %303 = vmatpush1.msra.mxu0 %v117
    %304 = vmatprep.subr.mxu0 0.0
    %305 = vmatpush1.msra.mxu0 %v116
    %306 = vmatprep.subr.mxu0 0.0
    %307 = vmatpush1.msra.mxu0 %v115
    %308 = vmatprep.subr.mxu0 0.0
    %309 = vmatpush1.msra.mxu0 %v114
    %310 = vmatprep.subr.mxu0 0.0
    %311 = vmatpush1.msra.mxu0 %v113
    %312 = vmatprep.subr.mxu0 0.0
    %313 = vmatpush1.msra.mxu0 %v112
    %314 = vmatprep.subr.mxu0 0.0
    %315 = vmatpush1.msra.mxu0 %v111
    %316 = vmatprep.subr.mxu0 0.0
    %317 = vmatpush1.msra.mxu0 %v110
    %318 = vmatprep.subr.mxu0 0.0
    %319 = vmatpush1.msra.mxu0 %v109
    %320 = vmatprep.subr.mxu0 0.0
    %321 = vmatpush1.msra.mxu0 %v108
    %322 = vmatprep.subr.mxu0 0.0
    %323 = vmatpush1.msra.mxu0 %v107
    %324 = vmatprep.subr.mxu0 0.0
    %325 = vmatpush1.msra.mxu0 %v106
    %326 = vmatprep.subr.mxu0 0.0
    %327 = vmatpush1.msra.mxu0 %v105
    %328 = vmatprep.subr.mxu0 0.0
    %329 = vmatpush1.msra.mxu0 %v104
    %330 = vmatprep.subr.mxu0 0.0
    %331 = vmatpush1.msra.mxu0 %v103
    %332 = vmatprep.subr.mxu0 0.0
    %333 = vmatpush1.msra.mxu0 %v102
    %334 = vmatprep.subr.mxu0 0.0
    %335 = vmatpush2.msra.mxu0 0.0
    %336 = vmatprep.subr.mxu0 0.0
    %337 = vmatpush2.msra.mxu0 0.0
    %338 = vmatprep.subr.mxu0 0.0
    %339 = vmatpush2.msra.mxu0 0.0
    %340 = vmatprep.subr.mxu0 0.0
    %341 = vmatpush2.msra.mxu0 0.0
    %342 = vmatprep.subr.mxu0 0.0
    %343 = vmatpush2.msra.mxu0 0.0
    %344 = vmatprep.subr.mxu0 0.0
    %345 = vmatpush2.msra.mxu0 0.0
    %346 = vmatprep.subr.mxu0 0.0
    %347 = vmatpush2.msra.mxu0 0.0
    %348 = vmatprep.subr.mxu0 0.0
    %349 = vmatpush2.msra.mxu0 0.0
    %350 = vmatprep.subr.mxu0 0.0
    %351 = vmatpush2.msra.mxu0 0.0
    %352 = vmatprep.subr.mxu0 0.0
    %353 = vmatpush2.msra.mxu0 0.0
    %354 = vmatprep.subr.mxu0 0.0
    %355 = vmatpush2.msra.mxu0 0.0
    %356 = vmatprep.subr.mxu0 0.0
    %357 = vmatpush2.msra.mxu0 0.0
    %358 = vmatprep.subr.mxu0 0.0
    %359 = vmatpush2.msra.mxu0 0.0
    %360 = vmatprep.subr.mxu0 0.0
    %361 = vmatpush2.msra.mxu0 0.0
    %362 = vmatprep.subr.mxu0 0.0
    %363 = vmatpush2.msra.mxu0 0.0
    %364 = vmatprep.subr.mxu0 0.0
    %365 = vmatpush2.msra.mxu0 0.0
    %366 = vmatprep.mubr.f32.mxu0 0.0
    %367 = vmatmul.mubr.f32.gmra.mxu0 %v294
    %v368 = vpop.f32.mrf.mxu0
    %v369 = vadd.f32 %v300, %v368
    %v370 = vpop.f32.mrf.mxu0
    %371 = vmatprep.mubr.f32.mxu0 0.0
    %372 = vmatmul.mubr.f32.gmra.mxu0 %v295
    %v373 = vpop.f32.mrf.mxu0
    %v374 = vadd.f32 %v300, %v373
    %v375 = vpop.f32.mrf.mxu0
    %376 = vdwg.mxu0
    %377 = vmax.xlane.f32.xlu0 %v369
    %v378 = vpop.xlane.xlu0 %377
    %379 = vmax.xlane.f32.xlu0 %v374
    %v380 = vpop.xlane.xlu0 %379
    %v381 = vsub.f32 %v369, %v378
    %v382 = vsub.f32 %v374, %v380
    %v383 = vmul.f32 %v381, 1.442695
    %v384 = vpow.pop %v383
    %v385 = vmul.f32 %v382, 1.442695
    %v386 = vpow.pop %v385
    %387 = vadd.xlane.f32.xlu0 %v384
    %v388 = vpop.xlane.xlu0 %387
    %389 = vadd.xlane.f32.xlu0 %v386
    %v390 = vpop.xlane.xlu0 %389
    %v391 = vrcp.pop %v388
    %v392 = vmul.f32 %v384, %v391
    %v393 = vrcp.pop %v390
    %v394 = vmul.f32 %v386, %v393
    %395 = vst [vmem:[#allocation10] sm:$0xff] %v392
    %396 = vst [vmem:[#allocation10 + $0x8] sm:$0xff] %v394
    // Predicated region
    $region46: #{tpu_custom_call.1} parent=1 // pred_check
      _
    $region47: #{tpu_custom_call.1} parent=1 // pred_check_branch
      %398 = sbr.rel (0) target = $region49
    $region48: #{tpu_custom_call.1} parent=1 // pred_region
      %s400 = ssub.s32 256, 256
      %401 = vsyncadd [#allocation4], %s400
      %s402 = sshll.u32 [#allocation10], 4
      %s403 = int_to_ptr.vmem [resolvable:$true] %s402
      %408 = dma.vmem_to_hbm [thread:$0]  %s403, 256, %s7, [#allocation4], 128, 128, 8
    $region49: #{tpu_custom_call.1} parent=1 // pred_fallthru
      _
    // Predicated region
    $region50: #{tpu_custom_call.1} parent=1 // pred_check
      _
    $region51: #{tpu_custom_call.1} parent=1 // pred_check_branch
      %410 = sbr.rel (0) target = $region53
    $region52: #{tpu_custom_call.1} parent=1 // pred_region
      %411 = dma.done [#allocation4], 256
    $region53: #{tpu_custom_call.1} parent=1 // pred_fallthru
      _
    %412 = vsyncpa [#allocation3], 1
    %413 = vsyncpa [#allocation6], 1
    %414 = vsyncpa [#allocation9], 1
    %415 = vsyncpa [#allocation4], 1

</llo_original>
